<compile_context>
chip_gen: v7x
topology: tpu7x:2x2x1
jax: 0.10.0
libtpu: 0.0.40
codegen_flags: <defaults>
</compile_context>

<pallas_src>
import functools

import jax
import jax.numpy as jnp
from jax.experimental import pallas as pl
from jax.experimental.pallas import tpu as pltpu

EPS = 1e-9


def _gumbel_softmax_kernel(logits_ref, noise_ref, z_ref, z_hard_ref, log_q_z_ref,
                           *, inv_tau):
    """Operates on transposed [D, block_cols] tiles: lanes = batch, sublanes = D."""
    x = logits_ref[...].astype(jnp.float32)
    u = noise_ref[...].astype(jnp.float32)

    # Gumbel noise: matches torch's noise.add_(eps).log_().neg_() applied twice.
    g = -jnp.log(-jnp.log(u + EPS) + EPS)

    # y = (x + g) / tau   ("+ eps" of the reference dropped: softmax is shift invariant)
    y = (x + g) * inv_tau

    # z = softmax(y) over the discrete dim (axis 0 = sublanes).
    y_max = jnp.max(y, axis=0, keepdims=True)
    ey = jnp.exp(y - y_max)
    z = ey * pl.reciprocal(jnp.sum(ey, axis=0, keepdims=True), approx=False)
    z_ref[...] = z.astype(z_ref.dtype)

    # Straight-through hard sample: one-hot of max(z) — same tie semantics as the
    # reference's torch.eq(y_max.data, y.data) on the softmax output.
    one_hot = z == jnp.max(z, axis=0, keepdims=True)
    z_hard_ref[...] = jnp.where(one_hot, 1, 0).astype(z_hard_ref.dtype)

    # log_q_z = log_softmax(logits); reuse x - x_max for both exp() and the result.
    xm = x - jnp.max(x, axis=0, keepdims=True)
    lse = jnp.log(jnp.sum(jnp.exp(xm), axis=0, keepdims=True))
    log_q_z_ref[...] = (xm - lse).astype(log_q_z_ref.dtype)


def _pick_block_cols(batch, d, per_buffer_bytes=1 << 20):
    """Samples (lanes) per tile.

    ~1 MiB per f32 array per grid step keeps the double-buffered working set
    (2 inputs + 3 outputs, x2 buffers ~= 8.5 MiB) inside v5e's 16 MiB scoped-VMEM
    default and far inside v6e/v7x (32 MiB scoped / 64 MiB physical per TC on v7x),
    while each step moves >= 1 MiB per array so the ~0.35 us/step overhead and DMA
    latency are fully hidden.  Large batches are capped so there are >= 4 grid steps,
    letting the 'parallel' axis shard across v7x's two TensorCores.
    """
    cols = max(128, (per_buffer_bytes // (d * 4)) // 128 * 128)
    if batch >= 4 * 128:
        cols = min(cols, max(128, pl.cdiv(pl.cdiv(batch, 4), 128) * 128))
    return cols


def gumbel_softmax_forward(logits, uniform_noise, tau=1.0, training=True,
                           block_cols=None, z_hard_dtype=jnp.int8):
    """Pallas implementation of GumbelSoftmax.forward.

    logits:        [B, D] float32
    uniform_noise: [B, D] float32 in [0, 1)   (replaces torch.rand inside forward)
    Returns (z if training else z_hard, params) mirroring the PyTorch module.
    z_hard holds exact {0,1} values and is emitted as int8 to save HBM bandwidth;
    cast where a float one-hot is required.
    """
    B, D = logits.shape

    tbl = int(block_cols) if block_cols is not None else _pick_block_cols(B, D)
    if tbl < B:
        tbl = max(128, (tbl // 128) * 128)   # lane (last) block dim: multiple of 128
    tbl = min(tbl, B)                        # ... or exactly the full batch extent
    n_blocks = pl.cdiv(B, tbl)

    # Lane-dense layout: [D, B] with the batch on lanes (layout plumbing only).
    logits_t = logits.T
    noise_t = uniform_noise.T

    blk = pl.BlockSpec((D, tbl), lambda i: (0, i))
    # NOTE: use pipeline_mode=pl.Buffered(3) on the input specs only if profiling
    # still shows exposed DMA with these tile sizes.

    out_shape = (
        jax.ShapeDtypeStruct((D, B), logits.dtype),   # z (soft sample)
        jax.ShapeDtypeStruct((D, B), z_hard_dtype),   # z_hard (exact 0/1)
        jax.ShapeDtypeStruct((D, B), logits.dtype),   # log_q_z
    )

    kernel = functools.partial(_gumbel_softmax_kernel, inv_tau=1.0 / float(tau))

    z_t, z_hard_t, log_q_z_t = pl.pallas_call(
        kernel,
        out_shape=out_shape,
        grid=(n_blocks,),
        in_specs=[blk, blk],
        out_specs=(blk, blk, blk),
        compiler_params=pltpu.CompilerParams(
            dimension_semantics=("parallel",)),        # samples are independent
    )(logits_t, noise_t)

    z, z_hard, log_q_z = z_t.T, z_hard_t.T, log_q_z_t.T

    params = {'z_soft': z, 'z_hard': z_hard, 'logits': logits,
              'log_q_z': log_q_z, 'tau_scalar': tau}
    ret = z if training else z_hard.astype(logits.dtype)
    return ret, {'z': z, 'discrete': params}


if __name__ == "__main__":
    # config = {'discrete_size': 16}  -> input/output size = 16
    batch_size = 200        # > one 128-lane block and not a multiple of it: exercises
                            # the multi-block grid AND the partial last block (no pad)
    discrete_size = 16
    tau = 1.0               # tau0; anneal() is a no-op on the first forward

    key = jax.random.PRNGKey(0)
    k_logits, k_noise = jax.random.split(key)
    logits = jax.random.normal(k_logits, (batch_size, discrete_size), dtype=jnp.float32)
    uniform_noise = jax.random.uniform(k_noise, (batch_size, discrete_size),
                                       dtype=jnp.float32)

    fwd = jax.jit(functools.partial(gumbel_softmax_forward, tau=tau, training=True,
                                    block_cols=128))
    out, params = fwd(logits, uniform_noise)
    z_hard = params['discrete']['z_hard']
    log_q_z = params['discrete']['log_q_z']
    jax.block_until_ready(out)
    jax.block_until_ready(z_hard)
    jax.block_until_ready(log_q_z)

    # Sanity checks against a pure-JAX reference (also validates the partial last block).
    g = -jnp.log(-jnp.log(uniform_noise + EPS) + EPS)
    z_ref = jax.nn.softmax((logits + g) / tau + EPS, axis=-1)
    log_q_z_ref = jax.nn.log_softmax(logits, axis=-1)

    assert out.shape == (batch_size, discrete_size)
    assert z_hard.shape == (batch_size, discrete_size)
    assert jnp.allclose(out, z_ref, atol=1e-5), "z mismatch"
    assert jnp.allclose(log_q_z, log_q_z_ref, atol=1e-5), "log_q_z mismatch"
    assert jnp.allclose(jnp.sum(z_hard.astype(jnp.float32), axis=-1),
                        jnp.ones((batch_size,)), atol=1e-6), "z_hard not one-hot"
    assert jnp.array_equal(jnp.argmax(z_hard, axis=-1),
                           jnp.argmax(z_ref, axis=-1)), "z_hard argmax mismatch"

    print("KERNEL_OK")
</pallas_src>

<mosaic_0001>
module attributes {stable_mosaic.version = 11 : i64} {
  func.func @_gumbel_softmax_kernel(%arg0: i32, %arg1: memref<16x128xf32, #tpu.memory_space<vmem>>, %arg2: memref<16x128xf32, #tpu.memory_space<vmem>>, %arg3: memref<16x128xf32, #tpu.memory_space<vmem>>, %arg4: memref<16x128xi8, #tpu.memory_space<vmem>>, %arg5: memref<16x128xf32, #tpu.memory_space<vmem>>) attributes {dimension_semantics = [#tpu.dimension_semantics<parallel>], iteration_bounds = array<i64: 2>, scalar_prefetch = 0 : i64, scratch_operands = 0 : i64, tpu.core_type = #tpu.core_type<tc>, window_params = [{transform_indices = @transform_0, window_bounds = array<i64: 16, 128>}, {transform_indices = @transform_1, window_bounds = array<i64: 16, 128>}, {transform_indices = @transform_2, window_bounds = array<i64: 16, 128>}, {transform_indices = @transform_3, window_bounds = array<i64: 16, 128>}, {transform_indices = @transform_4, window_bounds = array<i64: 16, 128>}]} {
    %c0 = arith.constant 0 : index
    %c0_0 = arith.constant 0 : index
    %0 = vector.load %arg1[%c0, %c0_0] : memref<16x128xf32, #tpu.memory_space<vmem>>, vector<16x128xf32>
    %c0_1 = arith.constant 0 : index
    %c0_2 = arith.constant 0 : index
    %1 = vector.load %arg2[%c0_1, %c0_2] : memref<16x128xf32, #tpu.memory_space<vmem>>, vector<16x128xf32>
    %cst = arith.constant 9.99999971E-10 : f32
    %2 = vector.broadcast %cst : f32 to vector<16x128xf32>
    %3 = arith.addf %1, %2 : vector<16x128xf32>
    %4 = math.log %3 : vector<16x128xf32>
    %cst_3 = arith.constant 0.000000e+00 : f32
    %5 = vector.broadcast %cst_3 : f32 to vector<16x128xf32>
    %6 = arith.subf %5, %4 : vector<16x128xf32>
    %cst_4 = arith.constant 9.99999971E-10 : f32
    %7 = vector.broadcast %cst_4 : f32 to vector<16x128xf32>
    %8 = arith.addf %6, %7 : vector<16x128xf32>
    %9 = math.log %8 : vector<16x128xf32>
    %cst_5 = arith.constant 0.000000e+00 : f32
    %10 = vector.broadcast %cst_5 : f32 to vector<16x128xf32>
    %11 = arith.subf %10, %9 : vector<16x128xf32>
    %12 = arith.addf %0, %11 : vector<16x128xf32>
    %cst_6 = arith.constant 1.000000e+00 : f32
    %13 = vector.broadcast %cst_6 : f32 to vector<16x128xf32>
    %14 = arith.mulf %12, %13 : vector<16x128xf32>
    %cst_7 = arith.constant dense<0xFF800000> : vector<128xf32>
    %15 = vector.multi_reduction <maximumf>, %14, %cst_7 [0] : vector<16x128xf32> to vector<128xf32>
    %16 = vector.shape_cast %15 : vector<128xf32> to vector<1x128xf32>
    %17 = vector.broadcast %16 : vector<1x128xf32> to vector<16x128xf32>
    %18 = arith.subf %14, %17 : vector<16x128xf32>
    %19 = math.exp %18 : vector<16x128xf32>
    %cst_8 = arith.constant dense<0.000000e+00> : vector<128xf32>
    %20 = vector.multi_reduction <add>, %19, %cst_8 [0] : vector<16x128xf32> to vector<128xf32>
    %21 = vector.shape_cast %20 : vector<128xf32> to vector<1x128xf32>
    %22 = tpu.reciprocal %21 : vector<1x128xf32> -> vector<1x128xf32>
    %23 = vector.broadcast %22 : vector<1x128xf32> to vector<16x128xf32>
    %24 = arith.mulf %19, %23 : vector<16x128xf32>
    %c0_9 = arith.constant 0 : index
    %c0_10 = arith.constant 0 : index
    %25 = vector.load %arg3[%c0_9, %c0_10] : memref<16x128xf32, #tpu.memory_space<vmem>>, vector<16x128xf32>
    tpu.vector_store %arg3[%c0_9, %c0_10], %24 {strides = array<i32>} : memref<16x128xf32, #tpu.memory_space<vmem>>, vector<16x128xf32>,
    %cst_11 = arith.constant dense<0xFF800000> : vector<128xf32>
    %26 = vector.multi_reduction <maximumf>, %24, %cst_11 [0] : vector<16x128xf32> to vector<128xf32>
    %27 = vector.shape_cast %26 : vector<128xf32> to vector<1x128xf32>
    %28 = vector.broadcast %27 : vector<1x128xf32> to vector<16x128xf32>
    %29 = arith.cmpf oeq, %24, %28 : vector<16x128xf32>
    %c1_i32 = arith.constant 1 : i32
    %c0_i32 = arith.constant 0 : i32
    %30 = vector.broadcast %c1_i32 : i32 to vector<16x128xi32>
    %31 = vector.broadcast %c0_i32 : i32 to vector<16x128xi32>
    %32 = arith.select %29, %30, %31 : vector<16x128xi1>, vector<16x128xi32>
    %33 = arith.trunci %32 : vector<16x128xi32> to vector<16x128xi8>
    %c0_12 = arith.constant 0 : index
    %c0_13 = arith.constant 0 : index
    %34 = vector.load %arg4[%c0_12, %c0_13] : memref<16x128xi8, #tpu.memory_space<vmem>>, vector<16x128xi8>
    tpu.vector_store %arg4[%c0_12, %c0_13], %33 {strides = array<i32>} : memref<16x128xi8, #tpu.memory_space<vmem>>, vector<16x128xi8>,
    %cst_14 = arith.constant dense<0xFF800000> : vector<128xf32>
    %35 = vector.multi_reduction <maximumf>, %0, %cst_14 [0] : vector<16x128xf32> to vector<128xf32>
    %36 = vector.shape_cast %35 : vector<128xf32> to vector<1x128xf32>
    %37 = vector.broadcast %36 : vector<1x128xf32> to vector<16x128xf32>
    %38 = arith.subf %0, %37 : vector<16x128xf32>
    %39 = math.exp %38 : vector<16x128xf32>
    %cst_15 = arith.constant dense<0.000000e+00> : vector<128xf32>
    %40 = vector.multi_reduction <add>, %39, %cst_15 [0] : vector<16x128xf32> to vector<128xf32>
    %41 = vector.shape_cast %40 : vector<128xf32> to vector<1x128xf32>
    %42 = math.log %41 : vector<1x128xf32>
    %43 = vector.broadcast %42 : vector<1x128xf32> to vector<16x128xf32>
    %44 = arith.subf %38, %43 : vector<16x128xf32>
    %c0_16 = arith.constant 0 : index
    %c0_17 = arith.constant 0 : index
    %45 = vector.load %arg5[%c0_16, %c0_17] : memref<16x128xf32, #tpu.memory_space<vmem>>, vector<16x128xf32>
    tpu.vector_store %arg5[%c0_16, %c0_17], %44 {strides = array<i32>} : memref<16x128xf32, #tpu.memory_space<vmem>>, vector<16x128xf32>,
    return
  }
  func.func @transform_0(%arg0: i32) -> (i32, i32) {
    %c0_i32 = arith.constant 0 : i32
    %c0_i32_0 = arith.constant 0 : i32
    return %c0_i32, %arg0 : i32, i32
  }
  func.func @transform_1(%arg0: i32) -> (i32, i32) {
    %c0_i32 = arith.constant 0 : i32
    %c0_i32_0 = arith.constant 0 : i32
    return %c0_i32, %arg0 : i32, i32
  }
  func.func @transform_2(%arg0: i32) -> (i32, i32) {
    %c0_i32 = arith.constant 0 : i32
    %c0_i32_0 = arith.constant 0 : i32
    return %c0_i32, %arg0 : i32, i32
  }
  func.func @transform_3(%arg0: i32) -> (i32, i32) {
    %c0_i32 = arith.constant 0 : i32
    %c0_i32_0 = arith.constant 0 : i32
    return %c0_i32, %arg0 : i32, i32
  }
  func.func @transform_4(%arg0: i32) -> (i32, i32) {
    %c0_i32 = arith.constant 0 : i32
    %c0_i32_0 = arith.constant 0 : i32
    return %c0_i32, %arg0 : i32, i32
  }
}

</mosaic_0001>

<llo_original>
// kernel: gumbel_softmax_forward.1
$region0: #{gumbel_softmax_forward.1}
  #allocation0 [shape = 'u32[]', space=smem, size = 0x4, offset = 0x4, fixed_abs, tag = 'smem constant byte address 0x4 - core index']
  #allocation1 [shape = 'u32[144,128]{1,0:T(1,128)}', space=vmem, size = 0x12000, scoped, tag = 'internal scratch']
  %s0 = inlined_call_operand.hbm [shape: f32[16,200], index: 0, kind: input, shape index: {}]
  %s1 = inlined_call_operand.hbm [shape: f32[16,200], index: 1, kind: input, shape index: {}]
  %s2 = inlined_call_operand.vmem [shape: f32[16,200], index: 2, kind: output, shape index: {0}]
  %s3 = inlined_call_operand.hbm [shape: s8[16,200], index: 3, kind: output, shape index: {1}]
  %s4 = inlined_call_operand.hbm [shape: f32[16,200], index: 4, kind: output, shape index: {2}]
  %5 = xla_tuple %s2, %s3, %s4
  %s6 = sld [smem:[#allocation0]]
  $region99: #{gumbel_softmax_forward.1} parent=0
    _
  %s8 = ssub.s32 1, %s6
  %s9 = scalar_select 0, %s8, %s6
  $region1: #{gumbel_softmax_forward.1} parent=0
    #allocation2 [shape = 'u8[16384]{0}', space=vmem, size = 0x4000, scoped, tag = 'input window, operand 0']
    #allocation3 [shape = 's32[2]{0}', space=sflag, size = 0x8, scoped, tag = 'scoped memory for gumbel_softmax_forward.1']
    #allocation4 [shape = 's32[2]{0}', space=sflag, size = 0x8, scoped, tag = 'scoped memory for gumbel_softmax_forward.1']
    #allocation5 [shape = 'u8[16384]{0}', space=vmem, size = 0x4000, scoped, tag = 'input window, operand 1']
    #allocation6 [shape = 's32[2]{0}', space=sflag, size = 0x8, scoped, tag = 'scoped memory for gumbel_softmax_forward.1']
    #allocation7 [shape = 'u8[16384]{0}', space=vmem, size = 0x4000, scoped, tag = 'output window, operand 0']
    #allocation8 [shape = 'u8[4096]{0}', space=vmem, size = 0x1000, scoped, tag = 'output window, operand 1']
    #allocation9 [shape = 'u8[16384]{0}', space=vmem, size = 0x4000, scoped, tag = 'output window, operand 2']
    #allocation10 [shape = 's32[2]{0}', space=sflag, size = 0x8, scoped, tag = 'scoped memory for gumbel_softmax_forward.1']
    %10 = vsyncpa [#allocation3], 0
    %s11 = scalar_lea.sflag [#allocation3], 1
    %12 = vsyncpa %s11, 0
    %13 = vsyncpa [#allocation6], 0
    %s14 = scalar_lea.sflag [#allocation6], 1
    %15 = vsyncpa %s14, 0
    %16 = vsyncpa [#allocation4], 0
    %s17 = scalar_lea.sflag [#allocation4], 1
    %18 = vsyncpa %s17, 0
    %19 = vsyncpa [#allocation10], 0
    %s20 = scalar_lea.sflag [#allocation10], 1
    %21 = vsyncpa %s20, 0
    loop: start=0, step=1, limit=4
    $region2: #{gumbel_softmax_forward.1} parent=1 // loop_pre_header
      _
    $region3: #{gumbel_softmax_forward.1} parent=1 // loop_header
      %s23 = sphi 0, %s27
      %p24 = scmp.ge.s32.totalorder %s23, 4
      %s33 = sphi 0, %s35
      %s36 = sphi 0, %s33
      %s37 = sphi 0, %s36
      %s53 = sphi 0, %s37
      %s59 = sphi 0, %s61
      %s62 = sphi 0, %s59
      %s63 = sphi 0, %s62
      %s79 = sphi 0, %s63
      %s85 = sphi 0, %s87
      %s88 = sphi 0, %s85
      %s89 = sphi 0, %s88
      %s105 = sphi 0, %s89
      %s111 = sphi 0, %s113
      %s114 = sphi 0, %s111
      %s115 = sphi 0, %s114
      %s131 = sphi 0, %s115
      %s137 = sphi 0, %s139
      %s140 = sphi 0, %s137
      %s141 = sphi 0, %s140
      %s157 = sphi 0, %s141
    $region4: #{gumbel_softmax_forward.1} parent=1 // loop_header_branch
      %26 = sbr.rel (%p24) target = $region8
    $region5: #{gumbel_softmax_forward.1} parent=1 // loop_body
      %s28 = ssub.s32 %s23, 1
      %s29 = ssub.s32 %s23, 2
      %s30 = sadd.s32 %s23, 1
      %s31 = ssub.s32 %s23, %s30
      %p32 = scmp.eq.s32.totalorder %s31, 0
      %s34 = sadd.s32 %s33, 1
      %s35 = scalar_select %p32, %s33, %s34
      %p38 = pneg %p32
      %p39 = scmp.eq.s32.totalorder %s23, 1
      %p40 = por %p38, %p39
      %p41 = scmp.ne.s32.totalorder %s33, %s36
      %p42 = scmp.eq.s32.totalorder %s23, 0
      %p43 = por %p41, %p42
      %p44 = scmp.ne.s32.totalorder %s33, %s36
      %p45 = scmp.eq.s32.totalorder %s28, 1
      %p46 = por %p44, %p45
      %p47 = scmp.ne.s32.totalorder %s36, %s37
      %p48 = scmp.eq.s32.totalorder %s28, 0
      %p49 = por %p47, %p48
      %p50 = scmp.ne.s32.totalorder %s36, %s37
      %p51 = scmp.eq.s32.totalorder %s29, 1
      %p52 = por %p50, %p51
      %p54 = scmp.ne.s32.totalorder %s37, %s53
      %p55 = scmp.eq.s32.totalorder %s29, 0
      %p56 = por %p54, %p55
      %s57 = ssub.s32 %s23, %s30
      %p58 = scmp.eq.s32.totalorder %s57, 0
      %s60 = sadd.s32 %s59, 1
      %s61 = scalar_select %p58, %s59, %s60
      %p64 = pneg %p58
      %p65 = scmp.eq.s32.totalorder %s23, 1
      %p66 = por %p64, %p65
      %p67 = scmp.ne.s32.totalorder %s59, %s62
      %p68 = scmp.eq.s32.totalorder %s23, 0
      %p69 = por %p67, %p68
      %p70 = scmp.ne.s32.totalorder %s59, %s62
      %p71 = scmp.eq.s32.totalorder %s28, 1
      %p72 = por %p70, %p71
      %p73 = scmp.ne.s32.totalorder %s62, %s63
      %p74 = scmp.eq.s32.totalorder %s28, 0
      %p75 = por %p73, %p74
      %p76 = scmp.ne.s32.totalorder %s62, %s63
      %p77 = scmp.eq.s32.totalorder %s29, 1
      %p78 = por %p76, %p77
      %p80 = scmp.ne.s32.totalorder %s63, %s79
      %p81 = scmp.eq.s32.totalorder %s29, 0
      %p82 = por %p80, %p81
      %s83 = ssub.s32 %s23, %s30
      %p84 = scmp.eq.s32.totalorder %s83, 0
      %s86 = sadd.s32 %s85, 1
      %s87 = scalar_select %p84, %s85, %s86
      %p90 = pneg %p84
      %p91 = scmp.eq.s32.totalorder %s23, 1
      %p92 = por %p90, %p91
      %p93 = scmp.ne.s32.totalorder %s85, %s88
      %p94 = scmp.eq.s32.totalorder %s23, 0
      %p95 = por %p93, %p94
      %p96 = scmp.ne.s32.totalorder %s85, %s88
      %p97 = scmp.eq.s32.totalorder %s28, 1
      %p98 = por %p96, %p97
      %p99 = scmp.ne.s32.totalorder %s88, %s89
      %p100 = scmp.eq.s32.totalorder %s28, 0
      %p101 = por %p99, %p100
      %p102 = scmp.ne.s32.totalorder %s88, %s89
      %p103 = scmp.eq.s32.totalorder %s29, 1
      %p104 = por %p102, %p103
      %p106 = scmp.ne.s32.totalorder %s89, %s105
      %p107 = scmp.eq.s32.totalorder %s29, 0
      %p108 = por %p106, %p107
      %s109 = ssub.s32 %s23, %s30
      %p110 = scmp.eq.s32.totalorder %s109, 0
      %s112 = sadd.s32 %s111, 1
      %s113 = scalar_select %p110, %s111, %s112
      %p116 = pneg %p110
      %p117 = scmp.eq.s32.totalorder %s23, 1
      %p118 = por %p116, %p117
      %p119 = scmp.ne.s32.totalorder %s111, %s114
      %p120 = scmp.eq.s32.totalorder %s23, 0
      %p121 = por %p119, %p120
      %p122 = scmp.ne.s32.totalorder %s111, %s114
      %p123 = scmp.eq.s32.totalorder %s28, 1
      %p124 = por %p122, %p123
      %p125 = scmp.ne.s32.totalorder %s114, %s115
      %p126 = scmp.eq.s32.totalorder %s28, 0
      %p127 = por %p125, %p126
      %p128 = scmp.ne.s32.totalorder %s114, %s115
      %p129 = scmp.eq.s32.totalorder %s29, 1
      %p130 = por %p128, %p129
      %p132 = scmp.ne.s32.totalorder %s115, %s131
      %p133 = scmp.eq.s32.totalorder %s29, 0
      %p134 = por %p132, %p133
      %s135 = ssub.s32 %s23, %s30
      %p136 = scmp.eq.s32.totalorder %s135, 0
      %s138 = sadd.s32 %s137, 1
      %s139 = scalar_select %p136, %s137, %s138
      %p142 = pneg %p136
      %p143 = scmp.eq.s32.totalorder %s23, 1
      %p144 = por %p142, %p143
      %p145 = scmp.ne.s32.totalorder %s137, %s140
      %p146 = scmp.eq.s32.totalorder %s23, 0
      %p147 = por %p145, %p146
      %p148 = scmp.ne.s32.totalorder %s137, %s140
      %p149 = scmp.eq.s32.totalorder %s28, 1
      %p150 = por %p148, %p149
      %p151 = scmp.ne.s32.totalorder %s140, %s141
      %p152 = scmp.eq.s32.totalorder %s28, 0
      %p153 = por %p151, %p152
      %p154 = scmp.ne.s32.totalorder %s140, %s141
      %p155 = scmp.eq.s32.totalorder %s29, 1
      %p156 = por %p154, %p155
      %p158 = scmp.ne.s32.totalorder %s141, %s157
      %p159 = scmp.eq.s32.totalorder %s29, 0
      %p160 = por %p158, %p159
      %p161 = scmp.le.s32.totalorder 1, %s23
      %p162 = scmp.lt.s32.totalorder %s23, 3
      %p163 = pnand %p161, %p162
      %p164 = pneg %p163
      // Predicated region
      $region9: #{gumbel_softmax_forward.1} parent=5 // pred_check
        _
      $region10: #{gumbel_softmax_forward.1} parent=5 // pred_check_branch
        %166 = sbr.rel (%p163) target = $region12
      $region11: #{gumbel_softmax_forward.1} parent=5 // pred_region
        %s167 = ssub.s32 %s23, 1
      $region12: #{gumbel_softmax_forward.1} parent=5 // pred_fallthru
        _
      %p168 = scmp.lt.s32.totalorder %s23, 2
      // Predicated region
      $region13: #{gumbel_softmax_forward.1} parent=5 // pred_check
        %p169 = pneg %p168
      $region14: #{gumbel_softmax_forward.1} parent=5 // pred_check_branch
        %171 = sbr.rel (%p169) target = $region16
      $region15: #{gumbel_softmax_forward.1} parent=5 // pred_region
        // Predicated region
        $region17: #{gumbel_softmax_forward.1} parent=15 // pred_check
          %p172 = pneg %p43
        $region18: #{gumbel_softmax_forward.1} parent=15 // pred_check_branch
          %174 = sbr.rel (%p172) target = $region20
        $region19: #{gumbel_softmax_forward.1} parent=15 // pred_region
          %s175 = sand.u32 %s33, 1
          %s176 = scalar_lea.sflag [#allocation3], %s175
          %s177 = sand.u32 %s33, 1
          %s178 = smul.addr %s177, 16
          %s179 = scalar_lea.vmem [#allocation2], %s178
          %s181 = ssub.s32 256, 256
          %182 = vsyncadd %s176, %s181
          %s183 = smul.addr %s23, 128
          %s184 = scalar_lea.hbm %s0, %s183
          %s185 = sshll.u32 %s179, 4
          %s186 = int_to_ptr.vmem [resolvable:$true] %s185
          %191 = dma.hbm_to_vmem [thread:$0]  %s184, 256, %s186, %s176, 256, 128, 8
        $region20: #{gumbel_softmax_forward.1} parent=15 // pred_fallthru
          _
        // Predicated region
        $region21: #{gumbel_softmax_forward.1} parent=15 // pred_check
          %p192 = pneg %p69
        $region22: #{gumbel_softmax_forward.1} parent=15 // pred_check_branch
          %194 = sbr.rel (%p192) target = $region24
        $region23: #{gumbel_softmax_forward.1} parent=15 // pred_region
          %s195 = sand.u32 %s59, 1
          %s196 = scalar_lea.sflag [#allocation6], %s195
          %s197 = sand.u32 %s59, 1
          %s198 = smul.addr %s197, 16
          %s199 = scalar_lea.vmem [#allocation5], %s198
          %s201 = ssub.s32 256, 256
          %202 = vsyncadd %s196, %s201
          %s203 = smul.addr %s23, 128
          %s204 = scalar_lea.hbm %s1, %s203
          %s205 = sshll.u32 %s199, 4
          %s206 = int_to_ptr.vmem [resolvable:$true] %s205
          %211 = dma.hbm_to_vmem [thread:$0]  %s204, 256, %s206, %s196, 256, 128, 8
        $region24: #{gumbel_softmax_forward.1} parent=15 // pred_fallthru
          _
      $region16: #{gumbel_softmax_forward.1} parent=5 // pred_fallthru
        _
      %p212 = scmp.le.s32.totalorder 1, %s23
      %p213 = scmp.lt.s32.totalorder %s23, 3
      %p214 = pnand %p212, %p213
      %p215 = pneg %p214
      // Predicated region
      $region25: #{gumbel_softmax_forward.1} parent=5 // pred_check
        _
      $region26: #{gumbel_softmax_forward.1} parent=5 // pred_check_branch
        %217 = sbr.rel (%p214) target = $region28
      $region27: #{gumbel_softmax_forward.1} parent=5 // pred_region
        %s218 = ssub.s32 %s23, 1
        %s219 = sand.u32 %s36, 1
        %s220 = scalar_lea.sflag [#allocation3], %s219
        %s221 = sand.u32 %s36, 1
        %s222 = smul.addr %s221, 16
        %s223 = scalar_lea.vmem [#allocation2], %s222
        // Predicated region
        $region29: #{gumbel_softmax_forward.1} parent=27 // pred_check
          %p224 = pneg %p49
        $region30: #{gumbel_softmax_forward.1} parent=27 // pred_check_branch
          %226 = sbr.rel (%p224) target = $region32
        $region31: #{gumbel_softmax_forward.1} parent=27 // pred_region
          %227 = dma.done %s220, 256
        $region32: #{gumbel_softmax_forward.1} parent=27 // pred_fallthru
          _
        %s228 = sand.u32 %s62, 1
        %s229 = scalar_lea.sflag [#allocation6], %s228
        %s230 = sand.u32 %s62, 1
        %s231 = smul.addr %s230, 16
        %s232 = scalar_lea.vmem [#allocation5], %s231
        // Predicated region
        $region33: #{gumbel_softmax_forward.1} parent=27 // pred_check
          %p233 = pneg %p75
        $region34: #{gumbel_softmax_forward.1} parent=27 // pred_check_branch
          %235 = sbr.rel (%p233) target = $region36
        $region35: #{gumbel_softmax_forward.1} parent=27 // pred_region
          %236 = dma.done %s229, 256
        $region36: #{gumbel_softmax_forward.1} parent=27 // pred_fallthru
          _
        %s237 = sand.u32 %s36, 1
        %s238 = scalar_lea.sflag [#allocation3], %s237
        %s239 = sand.u32 %s36, 1
        %s240 = smul.addr %s239, 16
        %s241 = scalar_lea.vmem [#allocation2], %s240
        %p242 = pneg %p49
        %p243 = pneg %p46
        %s244 = sand.u32 %s62, 1
        %s245 = scalar_lea.sflag [#allocation6], %s244
        %s246 = sand.u32 %s62, 1
        %s247 = smul.addr %s246, 16
        %s248 = scalar_lea.vmem [#allocation5], %s247
        %p249 = pneg %p75
        %p250 = pneg %p72
        %p251 = pneg %p101
        %p252 = pneg %p98
        %s253 = sand.u32 %s88, 1
        %s254 = sand.u32 %s88, 1
        %s255 = smul.addr %s254, 16
        %s256 = scalar_lea.vmem [#allocation7], %s255
        %p257 = pneg %p127
        %p258 = pneg %p124
        %s259 = sand.u32 %s114, 1
        %s260 = scalar_lea.sflag [#allocation4], %s259
        %s261 = sand.u32 %s114, 1
        %s262 = smul.addr %s261, 4
        %s263 = scalar_lea.vmem [#allocation8], %s262
        %p264 = pneg %p153
        %p265 = pneg %p150
        %s266 = sand.u32 %s140, 1
        %s267 = scalar_lea.sflag [#allocation10], %s266
        %s268 = sand.u32 %s140, 1
        %s269 = smul.addr %s268, 16
        %s270 = scalar_lea.vmem [#allocation9], %s269
        %v271 = vld [vmem:[%s223] sm:$0xff]
        %v272 = vld [vmem:[%s223 + $0x8] sm:$0xff]
        %v273 = vld [vmem:[%s232] sm:$0xff]
        %v274 = vld [vmem:[%s232 + $0x8] sm:$0xff]
        %v275 = vadd.f32 %v273, 1e-09
        %v276 = vadd.f32 %v274, 1e-09
        %v277 = vlog2.pop %v275
        %v278 = vmul.f32 %v277, 0.6931472
        %v279 = vlog2.pop %v276
        %v280 = vmul.f32 %v279, 0.6931472
        %v281 = vsub.f32 0.0, %v278
        %v282 = vsub.f32 0.0, %v280
        %v283 = vadd.f32 %v281, 1e-09
        %v284 = vadd.f32 %v282, 1e-09
        %v285 = vlog2.pop %v283
        %v286 = vmul.f32 %v285, 0.6931472
        %v287 = vlog2.pop %v284
        %v288 = vmul.f32 %v287, 0.6931472
        %v289 = vsub.f32 0.0, %v286
        %v290 = vsub.f32 0.0, %v288
        %v291 = vadd.f32 %v271, %v289
        %v292 = vadd.f32 %v272, %v290
        %v293 = vmax.f32 %v291, %v292
        %v294 = vrot.slane %v293, 4
        %v295 = vmax.f32 %v293, %v294
        %v296 = vrot.slane %v295, 2
        %v297 = vmax.f32 %v295, %v296
        %v298 = vrot.slane %v297, 1
        %v299 = vmax.f32 %v297, %v298
        %v300 = vsub.f32 %v291, %v299
        %v301 = vsub.f32 %v292, %v299
        %v302 = vmul.f32 %v300, 1.442695
        %v303 = vpow.pop %v302
        %v304 = vmul.f32 %v301, 1.442695
        %v305 = vpow.pop %v304
        %v306 = vadd.f32 %v303, %v305
        %v307 = vrot.slane %v306, 4
        %v308 = vadd.f32 %v306, %v307
        %v309 = vrot.slane %v308, 2
        %v310 = vadd.f32 %v308, %v309
        %v311 = vrot.slane %v310, 1
        %v312 = vadd.f32 %v310, %v311
        %v313 = vrcp.pop %v312
        %v314 = vmul.f32 %v303, %v313
        %v315 = vmul.f32 %v305, %v313
        %316 = vst [vmem:[%s256] sm:$0xff] %v314
        %317 = vst [vmem:[%s256 + $0x8] sm:$0xff] %v315
        %v318 = vmax.f32 %v314, %v315
        %v319 = vrot.slane %v318, 4
        %v320 = vmax.f32 %v318, %v319
        %v321 = vrot.slane %v320, 2
        %v322 = vmax.f32 %v320, %v321
        %v323 = vrot.slane %v322, 1
        %v324 = vmax.f32 %v322, %v323
        %vm325 = vcmp.eq.f32.partialorder %v314, %v324
        %vm326 = vcmp.eq.f32.partialorder %v315, %v324
        %v327 = vsel %vm325, 1, 0
        %v328 = vsel %vm326, 1, 0
        %v329 = vpack.c.b16 %v327, %v327
        %v330 = vpack.c.b8 %v329, %v329
        %v331 = vpack.c.b16 %v328, %v328
        %v332 = vpack.c.b8 %v331, %v331
        %333 = vst [vmem:[%s263] sm:$0x3] %v330
        %334 = vst [vmem:[%s263 + $0x2] sm:$0x3] %v332
        %v335 = vmax.f32 %v271, %v272
        %v336 = vrot.slane %v335, 4
        %v337 = vmax.f32 %v335, %v336
        %v338 = vrot.slane %v337, 2
        %v339 = vmax.f32 %v337, %v338
        %v340 = vrot.slane %v339, 1
        %v341 = vmax.f32 %v339, %v340
        %v342 = vsub.f32 %v271, %v341
        %v343 = vsub.f32 %v272, %v341
        %v344 = vmul.f32 %v342, 1.442695
        %v345 = vpow.pop %v344
        %v346 = vmul.f32 %v343, 1.442695
        %v347 = vpow.pop %v346
        %v348 = vadd.f32 %v345, %v347
        %v349 = vrot.slane %v348, 4
        %v350 = vadd.f32 %v348, %v349
        %v351 = vrot.slane %v350, 2
        %v352 = vadd.f32 %v350, %v351
        %v353 = vrot.slane %v352, 1
        %v354 = vadd.f32 %v352, %v353
        %v355 = vlog2.pop %v354
        %v356 = vmul.f32 %v355, 0.6931472
        %v357 = vsub.f32 %v342, %v356
        %v358 = vsub.f32 %v343, %v356
        %359 = vst [vmem:[%s270] sm:$0xff] %v357
        %360 = vst [vmem:[%s270 + $0x8] sm:$0xff] %v358
        %s361 = sand.u32 %s88, 1
        %s362 = sand.u32 %s88, 1
        %s363 = smul.addr %s362, 16
        %s364 = scalar_lea.vmem [#allocation7], %s363
        %s365 = sand.u32 %s114, 1
        %s366 = scalar_lea.sflag [#allocation4], %s365
        %s367 = sand.u32 %s114, 1
        %s368 = smul.addr %s367, 4
        %s369 = scalar_lea.vmem [#allocation8], %s368
        %s370 = sand.u32 %s140, 1
        %s371 = scalar_lea.sflag [#allocation10], %s370
        %s372 = sand.u32 %s140, 1
        %s373 = smul.addr %s372, 16
        %s374 = scalar_lea.vmem [#allocation9], %s373
        // Predicated region
        $region37: #{gumbel_softmax_forward.1} parent=27 // pred_check
          %p375 = pneg %p98
        $region38: #{gumbel_softmax_forward.1} parent=27 // pred_check_branch
          %377 = sbr.rel (%p375) target = $region40
        $region39: #{gumbel_softmax_forward.1} parent=27 // pred_region
          %s378 = smul.addr %s28, 8
          %s379 = scalar_lea.vmem %s2, %s378
          // Predicated region
          $region41: #{gumbel_softmax_forward.1} parent=39 // pred_check
            _
          $region42: #{gumbel_softmax_forward.1} parent=39 // pred_check_branch
            %381 = sbr.rel (0) target = $region44
          $region43: #{gumbel_softmax_forward.1} parent=39 // pred_region
            // Predicated region
            $region45: #{gumbel_softmax_forward.1} parent=43 // pred_check
              _
            $region46: #{gumbel_softmax_forward.1} parent=43 // pred_check_branch
              %383 = sbr.rel (0) target = $region48
            $region47: #{gumbel_softmax_forward.1} parent=43 // pred_region
              // Predicated region
              $region60: #{gumbel_softmax_forward.1} parent=47 // pred_check
                _
              $region61: #{gumbel_softmax_forward.1} parent=47 // pred_check_branch
                %400 = sbr.rel (0) target = $region63
              $region62: #{gumbel_softmax_forward.1} parent=47 // pred_region
                loop: start=0, step=1, limit=1
                $region64: #{gumbel_softmax_forward.1} parent=62 // loop_pre_header
                  _
                $region65: #{gumbel_softmax_forward.1} parent=62 // loop_header
                  %s402 = sphi 0, %s406
                  %p403 = scmp.ge.s32.totalorder %s402, 1
                  %s407 = sphi %s364, %s364
                  %s408 = sphi %s379, %s379
                $region66: #{gumbel_softmax_forward.1} parent=62 // loop_header_branch
                  %405 = sbr.rel (%p403) target = $region70
                $region67: #{gumbel_softmax_forward.1} parent=62 // loop_body
                  %v409 = vld [vmem:[%s407] sm:$0xff]
                  %410 = vst [vmem:[%s408] sm:$0xff] %v409
                  %v411 = vld [vmem:[%s407 + $0x8] sm:$0xff]
                  %412 = vst [vmem:[%s408 + $0x10] sm:$0xff] %v411
                $region68: #{gumbel_softmax_forward.1} parent=62 // loop_footer
                  %s406 = sadd.s32 1, %s402
                $region69: #{gumbel_softmax_forward.1} parent=62 // loop_footer_branch
                  %401 = sbr.rel target = $region65
                $region70: #{gumbel_softmax_forward.1} parent=62 // loop_exit
                  _
              $region63: #{gumbel_softmax_forward.1} parent=47 // pred_fallthru
                _
              // Predicated region
              $region71: #{gumbel_softmax_forward.1} parent=47 // pred_check
                _
              $region72: #{gumbel_softmax_forward.1} parent=47 // pred_check_branch
                %414 = sbr.rel target = $region74
              $region73: #{gumbel_softmax_forward.1} parent=47 // pred_region
                _
              $region74: #{gumbel_softmax_forward.1} parent=47 // pred_fallthru
                _
            $region48: #{gumbel_softmax_forward.1} parent=43 // pred_fallthru
              _
            // Predicated region
            $region49: #{gumbel_softmax_forward.1} parent=43 // pred_check
              _
            $region50: #{gumbel_softmax_forward.1} parent=43 // pred_check_branch
              %385 = sbr.rel target = $region52
            $region51: #{gumbel_softmax_forward.1} parent=43 // pred_region
              loop: start=0, step=1, limit=1
              $region53: #{gumbel_softmax_forward.1} parent=51 // loop_pre_header
                _
              $region54: #{gumbel_softmax_forward.1} parent=51 // loop_header
                %s388 = sphi 0, %s392
                %p389 = scmp.ge.s32.totalorder %s388, 1
                %s393 = sphi %s364, %s364
                %s394 = sphi %s379, %s379
              $region55: #{gumbel_softmax_forward.1} parent=51 // loop_header_branch
                %391 = sbr.rel (%p389) target = $region59
              $region56: #{gumbel_softmax_forward.1} parent=51 // loop_body
                %v395 = vld [vmem:[%s393] sm:$0xff]
                %396 = vst [vmem:[%s394] sm:$0xff] %v395
                %v397 = vld [vmem:[%s393 + $0x8] sm:$0xff]
                %398 = vst [vmem:[%s394 + $0x10] sm:$0xff] %v397
              $region57: #{gumbel_softmax_forward.1} parent=51 // loop_footer
                %s392 = sadd.s32 1, %s388
              $region58: #{gumbel_softmax_forward.1} parent=51 // loop_footer_branch
                %387 = sbr.rel target = $region54
              $region59: #{gumbel_softmax_forward.1} parent=51 // loop_exit
                _
            $region52: #{gumbel_softmax_forward.1} parent=43 // pred_fallthru
              _
          $region44: #{gumbel_softmax_forward.1} parent=39 // pred_fallthru
            _
          %415 = vnop
        $region40: #{gumbel_softmax_forward.1} parent=27 // pred_fallthru
          _
        // Predicated region
        $region75: #{gumbel_softmax_forward.1} parent=27 // pred_check
          %p416 = pneg %p124
        $region76: #{gumbel_softmax_forward.1} parent=27 // pred_check_branch
          %418 = sbr.rel (%p416) target = $region78
        $region77: #{gumbel_softmax_forward.1} parent=27 // pred_region
          %s420 = ssub.s32 64, 64
          %421 = vsyncadd %s366, %s420
          %s422 = smul.addr %s28, 32
          %s423 = scalar_lea.hbm %s3, %s422
          %s424 = sshll.u32 %s369, 4
          %s425 = int_to_ptr.vmem [resolvable:$true] %s424
          %430 = dma.vmem_to_hbm [thread:$0]  %s425, 64, %s423, %s366, 32, 64, 2
        $region78: #{gumbel_softmax_forward.1} parent=27 // pred_fallthru
          _
        // Predicated region
        $region79: #{gumbel_softmax_forward.1} parent=27 // pred_check
          %p431 = pneg %p150
        $region80: #{gumbel_softmax_forward.1} parent=27 // pred_check_branch
          %433 = sbr.rel (%p431) target = $region82
        $region81: #{gumbel_softmax_forward.1} parent=27 // pred_region
          %s435 = ssub.s32 256, 256
          %436 = vsyncadd %s371, %s435
          %s437 = smul.addr %s28, 128
          %s438 = scalar_lea.hbm %s4, %s437
          %s439 = sshll.u32 %s374, 4
          %s440 = int_to_ptr.vmem [resolvable:$true] %s439
          %445 = dma.vmem_to_hbm [thread:$0]  %s440, 256, %s438, %s371, 128, 256, 8
        $region82: #{gumbel_softmax_forward.1} parent=27 // pred_fallthru
          _
      $region28: #{gumbel_softmax_forward.1} parent=5 // pred_fallthru
        _
      %p446 = scmp.le.s32.totalorder 2, %s23
      // Predicated region
      $region83: #{gumbel_softmax_forward.1} parent=5 // pred_check
        %p447 = pneg %p446
      $region84: #{gumbel_softmax_forward.1} parent=5 // pred_check_branch
        %449 = sbr.rel (%p447) target = $region86
      $region85: #{gumbel_softmax_forward.1} parent=5 // pred_region
        %s450 = ssub.s32 %s23, 2
        // Predicated region
        $region87: #{gumbel_softmax_forward.1} parent=85 // pred_check
          %p451 = pneg %p104
        $region88: #{gumbel_softmax_forward.1} parent=85 // pred_check_branch
          %453 = sbr.rel (%p451) target = $region90
        $region89: #{gumbel_softmax_forward.1} parent=85 // pred_region
          %s454 = sand.u32 %s89, 1
          %s455 = sand.u32 %s89, 1
          %s456 = smul.addr %s455, 16
          %s457 = scalar_lea.vmem [#allocation7], %s456
        $region90: #{gumbel_softmax_forward.1} parent=85 // pred_fallthru
          _
        // Predicated region
        $region91: #{gumbel_softmax_forward.1} parent=85 // pred_check
          %p458 = pneg %p130
        $region92: #{gumbel_softmax_forward.1} parent=85 // pred_check_branch
          %460 = sbr.rel (%p458) target = $region94
        $region93: #{gumbel_softmax_forward.1} parent=85 // pred_region
          %s461 = sand.u32 %s115, 1
          %s462 = scalar_lea.sflag [#allocation4], %s461
          %s463 = sand.u32 %s115, 1
          %s464 = smul.addr %s463, 4
          %s465 = scalar_lea.vmem [#allocation8], %s464
          %466 = dma.done %s462, 64
        $region94: #{gumbel_softmax_forward.1} parent=85 // pred_fallthru
          _
        // Predicated region
        $region95: #{gumbel_softmax_forward.1} parent=85 // pred_check
          %p467 = pneg %p156
        $region96: #{gumbel_softmax_forward.1} parent=85 // pred_check_branch
          %469 = sbr.rel (%p467) target = $region98
        $region97: #{gumbel_softmax_forward.1} parent=85 // pred_region
          %s470 = sand.u32 %s141, 1
          %s471 = scalar_lea.sflag [#allocation10], %s470
          %s472 = sand.u32 %s141, 1
          %s473 = smul.addr %s472, 16
          %s474 = scalar_lea.vmem [#allocation9], %s473
          %475 = dma.done %s471, 256
        $region98: #{gumbel_softmax_forward.1} parent=85 // pred_fallthru
          _
      $region86: #{gumbel_softmax_forward.1} parent=5 // pred_fallthru
        _
    $region6: #{gumbel_softmax_forward.1} parent=1 // loop_footer
      %s27 = sadd.s32 1, %s23
    $region7: #{gumbel_softmax_forward.1} parent=1 // loop_footer_branch
      %22 = sbr.rel target = $region3
    $region8: #{gumbel_softmax_forward.1} parent=1 // loop_exit
      _
    %476 = vsyncpa [#allocation3], 1
    %s477 = scalar_lea.sflag [#allocation3], 1
    %478 = vsyncpa %s477, 1
    %479 = vsyncpa [#allocation6], 1
    %s480 = scalar_lea.sflag [#allocation6], 1
    %481 = vsyncpa %s480, 1
    %482 = vsyncpa [#allocation4], 1
    %s483 = scalar_lea.sflag [#allocation4], 1
    %484 = vsyncpa %s483, 1
    %485 = vsyncpa [#allocation10], 1
    %s486 = scalar_lea.sflag [#allocation10], 1
    %487 = vsyncpa %s486, 1

</llo_original>
